<compile_context>
chip_gen: v6e
topology: v6e:2x2x1
jax: 0.10.0
libtpu: 0.0.40
codegen_flags: <defaults>
</compile_context>

<pallas_src>
import jax
import jax.numpy as jnp
from jax import lax
from jax.experimental import pallas as pl
from jax.experimental.pallas import tpu as pltpu

# ---- Block configuration ----------------------------------------------------
IN_F, OUT_F = 4, 8
CPAD = 8                       # input channels zero-padded to a full sublane tile
STRIDES = 2
H = W = 16
HW = H * W                     # 256 flat pixels per image (lane axis)
HO = (H + 2 * 1 - 3) // STRIDES + 1    # 8
WO = (W + 2 * 1 - 3) // STRIDES + 1    # 8
QO = HO * WO                   # 64
K_IM2COL = 9 * CPAD            # 72
BN_EPS = 1e-5


def _bmm(lhs, rhs):
    """(n, a, k) x (n, k, b) -> (n, a, b): canonical batched MXU matmul."""
    return lax.dot_general(lhs, rhs, (((2,), (1,)), ((0,), (0,))),
                           preferred_element_type=jnp.float32)


# ---- Pallas kernel: one batch block (nb images) per grid step ----------------
def _block_kernel(x_ref, w1_ref, w2_ref, wsk_ref, sh_ref, sel_ref, o_ref):
    nb = x_ref.shape[0]

    # Column-edge lane masks over the flat pixel axis (row wrap-around).
    col = lax.broadcasted_iota(jnp.int32, (1, 1, HW), 2) % W
    at_left = col == 0
    at_right = col == (W - 1)

    def shifted(a, ky, kx, fill):
        # out[..., p] = a[..., p + (ky-1)*W + (kx-1)], `fill` outside the image.
        # The flat axis is exactly one image, so end fills implement the row
        # (y) padding; only the column (x) edges need an explicit lane mask.
        s = (ky - 1) * W + (kx - 1)
        if s > 0:
            t = jnp.concatenate(
                [a[..., s:], jnp.full(a.shape[:-1] + (s,), fill, a.dtype)],
                axis=-1)
        elif s < 0:
            t = jnp.concatenate(
                [jnp.full(a.shape[:-1] + (-s,), fill, a.dtype), a[..., :s]],
                axis=-1)
        else:
            t = a
        if kx == 2:            # reads column x+1 -> invalid at the right edge
            t = jnp.where(at_right, fill, t)
        elif kx == 0:          # reads column x-1 -> invalid at the left edge
            t = jnp.where(at_left, fill, t)
        return t

    def sepconv_bn(a, w_ref, shift):
        # im2col: 9 taps x 8 channels stacked on the sublane axis (each piece a
        # full 8-sublane tile), then ONE batched MXU matmul with K = 72.
        # Depthwise, pointwise and the BN scale are pre-fused into w_ref.
        patches = jnp.concatenate(
            [shifted(a, ky, kx, 0.0) for ky in range(3) for kx in range(3)],
            axis=1)                                         # (nb, 72, 256)
        w = jnp.broadcast_to(w_ref[...][None], (nb, OUT_F, K_IM2COL))
        return _bmm(w, patches) + shift                     # (nb, 8, 256)

    x = x_ref[...]                                          # (nb, 8, 256)
    sh = sh_ref[...]                                        # (3, 8, 256)

    h = sepconv_bn(jnp.maximum(x, 0.0), w1_ref, sh[0])
    y = sepconv_bn(jnp.maximum(h, 0.0), w2_ref, sh[1])

    # ---- MaxPool 3x3, stride 2, pad 1: separable 3-max on the flat axis ------
    ninf = float("-inf")
    hmax = jnp.maximum(y, jnp.maximum(shifted(y, 1, 2, ninf),
                                      shifted(y, 1, 0, ninf)))
    wmax = jnp.maximum(hmax, jnp.maximum(shifted(hmax, 2, 1, ninf),
                                         shifted(hmax, 0, 1, ninf)))
    # wmax[p] = 3x3 window max centered at p; the stride-2 centers are picked
    # with a 0/1 selection matmul (lane-dense, MXU is otherwise idle).
    sel = sel_ref[...]                                      # (256, 64)
    pooled = jnp.dot(wmax.reshape(nb * OUT_F, HW), sel,
                     preferred_element_type=jnp.float32).reshape(nb, OUT_F, QO)

    # ---- skip path: 1x1 conv, stride 2 (BN scale folded into wsk) ------------
    xs = jnp.dot(x.reshape(nb * CPAD, HW), sel,
                 preferred_element_type=jnp.float32).reshape(nb, CPAD, QO)
    wsk = jnp.broadcast_to(wsk_ref[...][None], (nb, OUT_F, CPAD))
    sk = _bmm(wsk, xs)                                      # (nb, 8, 64)

    o_ref[...] = pooled + sk + sh[2][:, :QO]


# ---- wrapper -----------------------------------------------------------------
def block_forward(x_nchw, params, batch_block=64):
    """x_nchw: (N, IN_F, 16, 16) float32 -> (N, OUT_F, 8, 8) float32."""
    n = x_nchw.shape[0]
    # Batch block: as big as possible (amortize per-step pipeline overhead and
    # grow matmul M), but keep >= 2 grid steps when the batch allows it so
    # v7x's two TensorCores can both work on the "parallel" batch axis.
    nb = max(1, min(batch_block, (n + 1) // 2)) if n > 1 else 1
    n_pad = pl.cdiv(n, nb) * nb

    x = x_nchw.reshape(n, IN_F, HW).astype(jnp.float32)
    x = jnp.pad(x, ((0, n_pad - n), (0, CPAD - IN_F), (0, 0)))   # (n_pad, 8, 256)

    def bn_fold(g, b, m, v):
        s = g / jnp.sqrt(v + BN_EPS)
        return s, b - m * s

    s1, t1 = bn_fold(*params["bn1"])
    s2, t2 = bn_fold(*params["bn2"])
    ssk, tsk = bn_fold(*params["bnsk"])

    def fuse_sepconv(dw, pw, scale, cin):
        # torch depthwise (cin,1,3,3), pointwise (OUT_F,cin,1,1) and BN scale
        # -> one (OUT_F, 9*CPAD) im2col weight, K index = tap*CPAD + channel.
        dwt = jnp.transpose(dw[:, 0], (1, 2, 0)).reshape(9, cin)     # (9, cin)
        pws = pw[:, :, 0, 0] * scale[:, None]                        # (8, cin)
        w = pws[:, None, :] * dwt[None, :, :]                        # (8, 9, cin)
        w = jnp.pad(w, ((0, 0), (0, 0), (0, CPAD - cin)))
        return w.reshape(OUT_F, K_IM2COL)

    w1 = fuse_sepconv(params["dw1"], params["pw1"], s1, IN_F)        # (8, 72)
    w2 = fuse_sepconv(params["dw2"], params["pw2"], s2, OUT_F)       # (8, 72)
    wsk = jnp.pad(params["wsk"][:, :, 0, 0] * ssk[:, None],
                  ((0, 0), (0, CPAD - IN_F)))                        # (8, 8)
    shifts = jnp.broadcast_to(
        jnp.stack([t1, t2, tsk], axis=0)[:, :, None], (3, OUT_F, HW))

    # 0/1 selection matrix: output pixel q=(yo,xo) <- flat input pixel (2yo,2xo).
    q = jnp.arange(QO)
    centers = (q // WO) * (2 * W) + (q % WO) * 2
    sel = (jnp.arange(HW)[:, None] == centers[None, :]).astype(jnp.float32)

    out = pl.pallas_call(
        _block_kernel,
        out_shape=jax.ShapeDtypeStruct((n_pad, OUT_F, QO), jnp.float32),
        grid_spec=pltpu.PrefetchScalarGridSpec(
            num_scalar_prefetch=0,
            grid=(n_pad // nb,),
            in_specs=[
                pl.BlockSpec((nb, CPAD, HW), lambda b: (b, 0, 0)),     # x
                pl.BlockSpec((OUT_F, K_IM2COL), lambda b: (0, 0)),     # fused w1
                pl.BlockSpec((OUT_F, K_IM2COL), lambda b: (0, 0)),     # fused w2
                pl.BlockSpec((OUT_F, CPAD), lambda b: (0, 0)),         # skip w
                pl.BlockSpec((3, OUT_F, HW), lambda b: (0, 0, 0)),     # BN shifts
                pl.BlockSpec((HW, QO), lambda b: (0, 0)),              # stride-2 sel
            ],
            out_specs=pl.BlockSpec((nb, OUT_F, QO), lambda b: (b, 0, 0)),
        ),
        compiler_params=pltpu.CompilerParams(
            dimension_semantics=("parallel",),
            # ~250-380 KiB live VMEM per image (im2col patches + activation
            # copies + pipeline buffers) plus fixed weights/headroom; request
            # just that instead of a blanket 48 MiB (v7x has only 64 MiB).
            vmem_limit_bytes=int((nb * 384 + 6 * 1024) * 1024),
        ),
    )(x, w1, w2, wsk, shifts, sel)

    return out[:n].reshape(n, OUT_F, HO, WO)                         # NCHW


# ---- pure-JAX reference (for a correctness check) ----------------------------
def block_reference(x_nchw, params):
    x = jnp.transpose(x_nchw, (0, 2, 3, 1)).astype(jnp.float32)
    dn = ('NHWC', 'HWIO', 'NHWC')

    def bn(y, g, b, m, v):
        return (y - m) / jnp.sqrt(v + BN_EPS) * g + b

    def sepconv(h, dw_t, pw_t, c_in):
        dw = jnp.transpose(dw_t, (2, 3, 1, 0))     # (C,1,3,3)  -> (3,3,1,C)
        pw = jnp.transpose(pw_t, (2, 3, 1, 0))     # (Co,Ci,1,1)-> (1,1,Ci,Co)
        h = lax.conv_general_dilated(h, dw, (1, 1), ((1, 1), (1, 1)),
                                     dimension_numbers=dn,
                                     feature_group_count=c_in,
                                     precision=lax.Precision.HIGHEST)
        h = lax.conv_general_dilated(h, pw, (1, 1), 'VALID',
                                     dimension_numbers=dn,
                                     precision=lax.Precision.HIGHEST)
        return h

    y = jnp.maximum(x, 0.0)
    y = sepconv(y, params["dw1"], params["pw1"], IN_F)
    y = bn(y, *params["bn1"])
    y = jnp.maximum(y, 0.0)
    y = sepconv(y, params["dw2"], params["pw2"], OUT_F)
    y = bn(y, *params["bn2"])
    y = lax.reduce_window(y, -jnp.inf, lax.max,
                          (1, 3, 3, 1), (1, STRIDES, STRIDES, 1),
                          ((0, 0), (1, 1), (1, 1), (0, 0)))
    wsk = jnp.transpose(params["wsk"], (2, 3, 1, 0))
    sk = lax.conv_general_dilated(x, wsk, (STRIDES, STRIDES), 'VALID',
                                  dimension_numbers=dn,
                                  precision=lax.Precision.HIGHEST)
    sk = bn(sk, *params["bnsk"])
    return jnp.transpose(y + sk, (0, 3, 1, 2))


if __name__ == "__main__":
    key = jax.random.PRNGKey(0)
    ks = jax.random.split(key, 16)

    def bn_params(k0, k1, k2, k3, c):
        return (jax.random.uniform(k0, (c,), jnp.float32, 0.5, 1.5),   # gamma
                jax.random.normal(k1, (c,), jnp.float32) * 0.1,        # beta
                jax.random.normal(k2, (c,), jnp.float32) * 0.1,        # running_mean
                jax.random.uniform(k3, (c,), jnp.float32, 0.5, 1.5))   # running_var

    params = {
        "dw1": jax.random.normal(ks[0], (IN_F, 1, 3, 3), jnp.float32) * 0.3,
        "pw1": jax.random.normal(ks[1], (OUT_F, IN_F, 1, 1), jnp.float32) * 0.3,
        "bn1": bn_params(ks[2], ks[3], ks[4], ks[5], OUT_F),
        "dw2": jax.random.normal(ks[6], (OUT_F, 1, 3, 3), jnp.float32) * 0.3,
        "pw2": jax.random.normal(ks[7], (OUT_F, OUT_F, 1, 1), jnp.float32) * 0.3,
        "bn2": bn_params(ks[8], ks[9], ks[10], ks[11], OUT_F),
        "wsk": jax.random.normal(ks[12], (OUT_F, IN_F, 1, 1), jnp.float32) * 0.3,
        "bnsk": bn_params(ks[13], ks[14], ks[0], ks[1], OUT_F),
    }

    # Primary check: batch = 2 (spec shapes).
    x = jax.random.normal(ks[15], (2, IN_F, H, W), jnp.float32)
    out = jax.block_until_ready(block_forward(x, params))
    assert out.shape == (2, OUT_F, HO, WO), out.shape
    ref = jax.block_until_ready(block_reference(x, params))
    err = float(jnp.max(jnp.abs(out - ref)))
    assert err < 5e-3, f"max abs error vs reference: {err}"

    # Secondary check: odd batch exercising nb > 1 blocks + batch padding.
    x5 = jax.random.normal(ks[14], (5, IN_F, H, W), jnp.float32)
    out5 = jax.block_until_ready(block_forward(x5, params))
    ref5 = jax.block_until_ready(block_reference(x5, params))
    err5 = float(jnp.max(jnp.abs(out5 - ref5)))
    assert err5 < 5e-3, f"max abs error vs reference (batch 5): {err5}"

    print("KERNEL_OK")
</pallas_src>

<mosaic_0001>
module attributes {stable_mosaic.version = 11 : i64} {
  func.func @_block_kernel(%arg0: i32, %arg1: memref<1x8x256xf32, #tpu.memory_space<vmem>>, %arg2: memref<8x72xf32, #tpu.memory_space<vmem>>, %arg3: memref<8x72xf32, #tpu.memory_space<vmem>>, %arg4: memref<8x8xf32, #tpu.memory_space<vmem>>, %arg5: memref<3x8x256xf32, #tpu.memory_space<vmem>>, %arg6: memref<256x64xf32, #tpu.memory_space<vmem>>, %arg7: memref<1x8x64xf32, #tpu.memory_space<vmem>>) attributes {dimension_semantics = [#tpu.dimension_semantics<parallel>], iteration_bounds = array<i64: 2>, scalar_prefetch = 0 : i64, scratch_operands = 0 : i64, tpu.core_type = #tpu.core_type<tc>, window_params = [{transform_indices = @transform_0, window_bounds = array<i64: 1, 8, 256>}, {pipeline_mode = #tpu.pipeline_mode<synchronous>, transform_indices = @transform_1, window_bounds = array<i64: 8, 72>}, {pipeline_mode = #tpu.pipeline_mode<synchronous>, transform_indices = @transform_2, window_bounds = array<i64: 8, 72>}, {pipeline_mode = #tpu.pipeline_mode<synchronous>, transform_indices = @transform_3, window_bounds = array<i64: 8, 8>}, {pipeline_mode = #tpu.pipeline_mode<synchronous>, transform_indices = @transform_4, window_bounds = array<i64: 3, 8, 256>}, {pipeline_mode = #tpu.pipeline_mode<synchronous>, transform_indices = @transform_5, window_bounds = array<i64: 256, 64>}, {transform_indices = @transform_6, window_bounds = array<i64: 1, 8, 64>}]} {
    %0 = tpu.iota {dimensions = array<i32: 2>} : vector<1x1x256xi32>
    %c16_i32 = arith.constant 16 : i32
    %c0_i32 = arith.constant 0 : i32
    %1 = arith.cmpi eq, %c16_i32, %c0_i32 : i32
    %c1_i32 = arith.constant 1 : i32
    %2 = arith.select %1, %c1_i32, %c16_i32 : i32
    %3 = vector.broadcast %2 : i32 to vector<1x1x256xi32>
    %4 = arith.remsi %0, %3 : vector<1x1x256xi32>
    %c0_i32_0 = arith.constant 0 : i32
    %5 = vector.broadcast %c0_i32_0 : i32 to vector<1x1x256xi32>
    %6 = arith.cmpi ne, %4, %5 : vector<1x1x256xi32>
    %c0_i32_1 = arith.constant 0 : i32
    %7 = vector.broadcast %c0_i32_1 : i32 to vector<1x1x256xi32>
    %8 = arith.cmpi slt, %4, %7 : vector<1x1x256xi32>
    %c0_i32_2 = arith.constant 0 : i32
    %9 = arith.cmpi slt, %2, %c0_i32_2 : i32
    %10 = vector.broadcast %9 : i1 to vector<1x1x256xi1>
    %11 = vector.broadcast %10 : vector<1x1x256xi1> to vector<1x1x256xi1>
    %12 = arith.xori %8, %11 : vector<1x1x256xi1>
    %13 = arith.andi %12, %6 : vector<1x1x256xi1>
    %14 = vector.broadcast %2 : i32 to vector<1x1x256xi32>
    %15 = arith.addi %4, %14 : vector<1x1x256xi32>
    %16 = arith.select %13, %15, %4 : vector<1x1x256xi1>, vector<1x1x256xi32>
    %c0_i32_3 = arith.constant 0 : i32
    %17 = vector.broadcast %c0_i32_3 : i32 to vector<1x1x256xi32>
    %18 = arith.cmpi eq, %16, %17 : vector<1x1x256xi32>
    %c15_i32 = arith.constant 15 : i32
    %19 = vector.broadcast %c15_i32 : i32 to vector<1x1x256xi32>
    %20 = arith.cmpi eq, %16, %19 : vector<1x1x256xi32>
    %c0 = arith.constant 0 : index
    %c0_4 = arith.constant 0 : index
    %c0_5 = arith.constant 0 : index
    %21 = vector.load %arg1[%c0, %c0_4, %c0_5] : memref<1x8x256xf32, #tpu.memory_space<vmem>>, vector<1x8x256xf32>
    %c0_6 = arith.constant 0 : index
    %c0_7 = arith.constant 0 : index
    %c0_8 = arith.constant 0 : index
    %22 = vector.load %arg5[%c0_6, %c0_7, %c0_8] : memref<3x8x256xf32, #tpu.memory_space<vmem>>, vector<3x8x256xf32>
    %cst = arith.constant 0.000000e+00 : f32
    %23 = vector.broadcast %cst : f32 to vector<1x8x256xf32>
    %24 = arith.maximumf %21, %23 : vector<1x8x256xf32>
    %25 = vector.extract_strided_slice %22 {offsets = [0, 0, 0], sizes = [1, 8, 256], strides = [1, 1, 1]} : vector<3x8x256xf32> to vector<1x8x256xf32>
    %26 = vector.shape_cast %25 : vector<1x8x256xf32> to vector<8x256xf32>
    %cst_9 = arith.constant 0.000000e+00 : f32
    %27 = vector.broadcast %cst_9 : f32 to vector<1x8x17xf32>
    %28 = vector.extract_strided_slice %24 {offsets = [0, 0, 0], sizes = [1, 8, 239], strides = [1, 1, 1]} : vector<1x8x256xf32> to vector<1x8x239xf32>
    %29 = tpu.concatenate %27, %28 in 2 : vector<1x8x17xf32>, vector<1x8x239xf32> -> vector<1x8x256xf32>
    %cst_10 = arith.constant 0.000000e+00 : f32
    %30 = vector.shape_cast %18 : vector<1x1x256xi1> to vector<1x1x256xi1>
    %31 = vector.broadcast %30 : vector<1x1x256xi1> to vector<1x8x256xi1>
    %32 = vector.broadcast %cst_10 : f32 to vector<1x8x256xf32>
    %33 = arith.select %31, %32, %29 : vector<1x8x256xi1>, vector<1x8x256xf32>
    %cst_11 = arith.constant 0.000000e+00 : f32
    %34 = vector.broadcast %cst_11 : f32 to vector<1x8x16xf32>
    %35 = vector.extract_strided_slice %24 {offsets = [0, 0, 0], sizes = [1, 8, 240], strides = [1, 1, 1]} : vector<1x8x256xf32> to vector<1x8x240xf32>
    %36 = tpu.concatenate %34, %35 in 2 : vector<1x8x16xf32>, vector<1x8x240xf32> -> vector<1x8x256xf32>
    %cst_12 = arith.constant 0.000000e+00 : f32
    %37 = vector.broadcast %cst_12 : f32 to vector<1x8x15xf32>
    %38 = vector.extract_strided_slice %24 {offsets = [0, 0, 0], sizes = [1, 8, 241], strides = [1, 1, 1]} : vector<1x8x256xf32> to vector<1x8x241xf32>
    %39 = tpu.concatenate %37, %38 in 2 : vector<1x8x15xf32>, vector<1x8x241xf32> -> vector<1x8x256xf32>
    %cst_13 = arith.constant 0.000000e+00 : f32
    %40 = vector.shape_cast %20 : vector<1x1x256xi1> to vector<1x1x256xi1>
    %41 = vector.broadcast %40 : vector<1x1x256xi1> to vector<1x8x256xi1>
    %42 = vector.broadcast %cst_13 : f32 to vector<1x8x256xf32>
    %43 = arith.select %41, %42, %39 : vector<1x8x256xi1>, vector<1x8x256xf32>
    %cst_14 = arith.constant 0.000000e+00 : f32
    %44 = vector.broadcast %cst_14 : f32 to vector<1x8x1xf32>
    %45 = vector.extract_strided_slice %24 {offsets = [0, 0, 0], sizes = [1, 8, 255], strides = [1, 1, 1]} : vector<1x8x256xf32> to vector<1x8x255xf32>
    %46 = tpu.concatenate %44, %45 in 2 : vector<1x8x1xf32>, vector<1x8x255xf32> -> vector<1x8x256xf32>
    %cst_15 = arith.constant 0.000000e+00 : f32
    %47 = vector.shape_cast %18 : vector<1x1x256xi1> to vector<1x1x256xi1>
    %48 = vector.broadcast %47 : vector<1x1x256xi1> to vector<1x8x256xi1>
    %49 = vector.broadcast %cst_15 : f32 to vector<1x8x256xf32>
    %50 = arith.select %48, %49, %46 : vector<1x8x256xi1>, vector<1x8x256xf32>
    %51 = vector.extract_strided_slice %24 {offsets = [0, 0, 1], sizes = [1, 8, 255], strides = [1, 1, 1]} : vector<1x8x256xf32> to vector<1x8x255xf32>
    %cst_16 = arith.constant 0.000000e+00 : f32
    %52 = vector.broadcast %cst_16 : f32 to vector<1x8x1xf32>
    %53 = tpu.concatenate %51, %52 in 2 : vector<1x8x255xf32>, vector<1x8x1xf32> -> vector<1x8x256xf32>
    %cst_17 = arith.constant 0.000000e+00 : f32
    %54 = vector.shape_cast %20 : vector<1x1x256xi1> to vector<1x1x256xi1>
    %55 = vector.broadcast %54 : vector<1x1x256xi1> to vector<1x8x256xi1>
    %56 = vector.broadcast %cst_17 : f32 to vector<1x8x256xf32>
    %57 = arith.select %55, %56, %53 : vector<1x8x256xi1>, vector<1x8x256xf32>
    %58 = vector.extract_strided_slice %24 {offsets = [0, 0, 15], sizes = [1, 8, 241], strides = [1, 1, 1]} : vector<1x8x256xf32> to vector<1x8x241xf32>
    %cst_18 = arith.constant 0.000000e+00 : f32
    %59 = vector.broadcast %cst_18 : f32 to vector<1x8x15xf32>
    %60 = tpu.concatenate %58, %59 in 2 : vector<1x8x241xf32>, vector<1x8x15xf32> -> vector<1x8x256xf32>
    %cst_19 = arith.constant 0.000000e+00 : f32
    %61 = vector.shape_cast %18 : vector<1x1x256xi1> to vector<1x1x256xi1>
    %62 = vector.broadcast %61 : vector<1x1x256xi1> to vector<1x8x256xi1>
    %63 = vector.broadcast %cst_19 : f32 to vector<1x8x256xf32>
    %64 = arith.select %62, %63, %60 : vector<1x8x256xi1>, vector<1x8x256xf32>
    %65 = vector.extract_strided_slice %24 {offsets = [0, 0, 16], sizes = [1, 8, 240], strides = [1, 1, 1]} : vector<1x8x256xf32> to vector<1x8x240xf32>
    %cst_20 = arith.constant 0.000000e+00 : f32
    %66 = vector.broadcast %cst_20 : f32 to vector<1x8x16xf32>
    %67 = tpu.concatenate %65, %66 in 2 : vector<1x8x240xf32>, vector<1x8x16xf32> -> vector<1x8x256xf32>
    %68 = vector.extract_strided_slice %24 {offsets = [0, 0, 17], sizes = [1, 8, 239], strides = [1, 1, 1]} : vector<1x8x256xf32> to vector<1x8x239xf32>
    %cst_21 = arith.constant 0.000000e+00 : f32
    %69 = vector.broadcast %cst_21 : f32 to vector<1x8x17xf32>
    %70 = tpu.concatenate %68, %69 in 2 : vector<1x8x239xf32>, vector<1x8x17xf32> -> vector<1x8x256xf32>
    %cst_22 = arith.constant 0.000000e+00 : f32
    %71 = vector.shape_cast %20 : vector<1x1x256xi1> to vector<1x1x256xi1>
    %72 = vector.broadcast %71 : vector<1x1x256xi1> to vector<1x8x256xi1>
    %73 = vector.broadcast %cst_22 : f32 to vector<1x8x256xf32>
    %74 = arith.select %72, %73, %70 : vector<1x8x256xi1>, vector<1x8x256xf32>
    %75 = tpu.concatenate %33, %36, %43, %50, %24, %57, %64, %67, %74 in 1 : vector<1x8x256xf32>, vector<1x8x256xf32>, vector<1x8x256xf32>, vector<1x8x256xf32>, vector<1x8x256xf32>, vector<1x8x256xf32>, vector<1x8x256xf32>, vector<1x8x256xf32>, vector<1x8x256xf32> -> vector<1x72x256xf32>
    %c0_23 = arith.constant 0 : index
    %c0_24 = arith.constant 0 : index
    %76 = vector.load %arg2[%c0_23, %c0_24] : memref<8x72xf32, #tpu.memory_space<vmem>>, vector<8x72xf32>
    %77 = vector.shape_cast %76 : vector<8x72xf32> to vector<1x8x72xf32>
    %cst_25 = arith.constant dense<0.000000e+00> : vector<1x8x256xf32>
    %78 = tpu.matmul %77, %75, %cst_25 {dimension_numbers = #tpu.dot_dimension_numbers<[2], [1], [1], [2], [0, 0, 0, 1, 1, 2], [0], [0]>} : vector<1x8x72xf32>, vector<1x72x256xf32>, vector<1x8x256xf32> -> vector<1x8x256xf32>
    %79 = vector.shape_cast %26 : vector<8x256xf32> to vector<1x8x256xf32>
    %80 = arith.addf %78, %79 : vector<1x8x256xf32>
    %cst_26 = arith.constant 0.000000e+00 : f32
    %81 = vector.broadcast %cst_26 : f32 to vector<1x8x256xf32>
    %82 = arith.maximumf %80, %81 : vector<1x8x256xf32>
    %83 = vector.extract_strided_slice %22 {offsets = [1, 0, 0], sizes = [1, 8, 256], strides = [1, 1, 1]} : vector<3x8x256xf32> to vector<1x8x256xf32>
    %84 = vector.shape_cast %83 : vector<1x8x256xf32> to vector<8x256xf32>
    %cst_27 = arith.constant 0.000000e+00 : f32
    %85 = vector.broadcast %cst_27 : f32 to vector<1x8x17xf32>
    %86 = vector.extract_strided_slice %82 {offsets = [0, 0, 0], sizes = [1, 8, 239], strides = [1, 1, 1]} : vector<1x8x256xf32> to vector<1x8x239xf32>
    %87 = tpu.concatenate %85, %86 in 2 : vector<1x8x17xf32>, vector<1x8x239xf32> -> vector<1x8x256xf32>
    %cst_28 = arith.constant 0.000000e+00 : f32
    %88 = vector.shape_cast %18 : vector<1x1x256xi1> to vector<1x1x256xi1>
    %89 = vector.broadcast %88 : vector<1x1x256xi1> to vector<1x8x256xi1>
    %90 = vector.broadcast %cst_28 : f32 to vector<1x8x256xf32>
    %91 = arith.select %89, %90, %87 : vector<1x8x256xi1>, vector<1x8x256xf32>
    %cst_29 = arith.constant 0.000000e+00 : f32
    %92 = vector.broadcast %cst_29 : f32 to vector<1x8x16xf32>
    %93 = vector.extract_strided_slice %82 {offsets = [0, 0, 0], sizes = [1, 8, 240], strides = [1, 1, 1]} : vector<1x8x256xf32> to vector<1x8x240xf32>
    %94 = tpu.concatenate %92, %93 in 2 : vector<1x8x16xf32>, vector<1x8x240xf32> -> vector<1x8x256xf32>
    %cst_30 = arith.constant 0.000000e+00 : f32
    %95 = vector.broadcast %cst_30 : f32 to vector<1x8x15xf32>
    %96 = vector.extract_strided_slice %82 {offsets = [0, 0, 0], sizes = [1, 8, 241], strides = [1, 1, 1]} : vector<1x8x256xf32> to vector<1x8x241xf32>
    %97 = tpu.concatenate %95, %96 in 2 : vector<1x8x15xf32>, vector<1x8x241xf32> -> vector<1x8x256xf32>
    %cst_31 = arith.constant 0.000000e+00 : f32
    %98 = vector.shape_cast %20 : vector<1x1x256xi1> to vector<1x1x256xi1>
    %99 = vector.broadcast %98 : vector<1x1x256xi1> to vector<1x8x256xi1>
    %100 = vector.broadcast %cst_31 : f32 to vector<1x8x256xf32>
    %101 = arith.select %99, %100, %97 : vector<1x8x256xi1>, vector<1x8x256xf32>
    %cst_32 = arith.constant 0.000000e+00 : f32
    %102 = vector.broadcast %cst_32 : f32 to vector<1x8x1xf32>
    %103 = vector.extract_strided_slice %82 {offsets = [0, 0, 0], sizes = [1, 8, 255], strides = [1, 1, 1]} : vector<1x8x256xf32> to vector<1x8x255xf32>
    %104 = tpu.concatenate %102, %103 in 2 : vector<1x8x1xf32>, vector<1x8x255xf32> -> vector<1x8x256xf32>
    %cst_33 = arith.constant 0.000000e+00 : f32
    %105 = vector.shape_cast %18 : vector<1x1x256xi1> to vector<1x1x256xi1>
    %106 = vector.broadcast %105 : vector<1x1x256xi1> to vector<1x8x256xi1>
    %107 = vector.broadcast %cst_33 : f32 to vector<1x8x256xf32>
    %108 = arith.select %106, %107, %104 : vector<1x8x256xi1>, vector<1x8x256xf32>
    %109 = vector.extract_strided_slice %82 {offsets = [0, 0, 1], sizes = [1, 8, 255], strides = [1, 1, 1]} : vector<1x8x256xf32> to vector<1x8x255xf32>
    %cst_34 = arith.constant 0.000000e+00 : f32
    %110 = vector.broadcast %cst_34 : f32 to vector<1x8x1xf32>
    %111 = tpu.concatenate %109, %110 in 2 : vector<1x8x255xf32>, vector<1x8x1xf32> -> vector<1x8x256xf32>
    %cst_35 = arith.constant 0.000000e+00 : f32
    %112 = vector.shape_cast %20 : vector<1x1x256xi1> to vector<1x1x256xi1>
    %113 = vector.broadcast %112 : vector<1x1x256xi1> to vector<1x8x256xi1>
    %114 = vector.broadcast %cst_35 : f32 to vector<1x8x256xf32>
    %115 = arith.select %113, %114, %111 : vector<1x8x256xi1>, vector<1x8x256xf32>
    %116 = vector.extract_strided_slice %82 {offsets = [0, 0, 15], sizes = [1, 8, 241], strides = [1, 1, 1]} : vector<1x8x256xf32> to vector<1x8x241xf32>
    %cst_36 = arith.constant 0.000000e+00 : f32
    %117 = vector.broadcast %cst_36 : f32 to vector<1x8x15xf32>
    %118 = tpu.concatenate %116, %117 in 2 : vector<1x8x241xf32>, vector<1x8x15xf32> -> vector<1x8x256xf32>
    %cst_37 = arith.constant 0.000000e+00 : f32
    %119 = vector.shape_cast %18 : vector<1x1x256xi1> to vector<1x1x256xi1>
    %120 = vector.broadcast %119 : vector<1x1x256xi1> to vector<1x8x256xi1>
    %121 = vector.broadcast %cst_37 : f32 to vector<1x8x256xf32>
    %122 = arith.select %120, %121, %118 : vector<1x8x256xi1>, vector<1x8x256xf32>
    %123 = vector.extract_strided_slice %82 {offsets = [0, 0, 16], sizes = [1, 8, 240], strides = [1, 1, 1]} : vector<1x8x256xf32> to vector<1x8x240xf32>
    %cst_38 = arith.constant 0.000000e+00 : f32
    %124 = vector.broadcast %cst_38 : f32 to vector<1x8x16xf32>
    %125 = tpu.concatenate %123, %124 in 2 : vector<1x8x240xf32>, vector<1x8x16xf32> -> vector<1x8x256xf32>
    %126 = vector.extract_strided_slice %82 {offsets = [0, 0, 17], sizes = [1, 8, 239], strides = [1, 1, 1]} : vector<1x8x256xf32> to vector<1x8x239xf32>
    %cst_39 = arith.constant 0.000000e+00 : f32
    %127 = vector.broadcast %cst_39 : f32 to vector<1x8x17xf32>
    %128 = tpu.concatenate %126, %127 in 2 : vector<1x8x239xf32>, vector<1x8x17xf32> -> vector<1x8x256xf32>
    %cst_40 = arith.constant 0.000000e+00 : f32
    %129 = vector.shape_cast %20 : vector<1x1x256xi1> to vector<1x1x256xi1>
    %130 = vector.broadcast %129 : vector<1x1x256xi1> to vector<1x8x256xi1>
    %131 = vector.broadcast %cst_40 : f32 to vector<1x8x256xf32>
    %132 = arith.select %130, %131, %128 : vector<1x8x256xi1>, vector<1x8x256xf32>
    %133 = tpu.concatenate %91, %94, %101, %108, %82, %115, %122, %125, %132 in 1 : vector<1x8x256xf32>, vector<1x8x256xf32>, vector<1x8x256xf32>, vector<1x8x256xf32>, vector<1x8x256xf32>, vector<1x8x256xf32>, vector<1x8x256xf32>, vector<1x8x256xf32>, vector<1x8x256xf32> -> vector<1x72x256xf32>
    %c0_41 = arith.constant 0 : index
    %c0_42 = arith.constant 0 : index
    %134 = vector.load %arg3[%c0_41, %c0_42] : memref<8x72xf32, #tpu.memory_space<vmem>>, vector<8x72xf32>
    %135 = vector.shape_cast %134 : vector<8x72xf32> to vector<1x8x72xf32>
    %cst_43 = arith.constant dense<0.000000e+00> : vector<1x8x256xf32>
    %136 = tpu.matmul %135, %133, %cst_43 {dimension_numbers = #tpu.dot_dimension_numbers<[2], [1], [1], [2], [0, 0, 0, 1, 1, 2], [0], [0]>} : vector<1x8x72xf32>, vector<1x72x256xf32>, vector<1x8x256xf32> -> vector<1x8x256xf32>
    %137 = vector.shape_cast %84 : vector<8x256xf32> to vector<1x8x256xf32>
    %138 = arith.addf %136, %137 : vector<1x8x256xf32>
    %139 = vector.extract_strided_slice %138 {offsets = [0, 0, 1], sizes = [1, 8, 255], strides = [1, 1, 1]} : vector<1x8x256xf32> to vector<1x8x255xf32>
    %cst_44 = arith.constant 0xFF800000 : f32
    %140 = vector.broadcast %cst_44 : f32 to vector<1x8x1xf32>
    %141 = tpu.concatenate %139, %140 in 2 : vector<1x8x255xf32>, vector<1x8x1xf32> -> vector<1x8x256xf32>
    %cst_45 = arith.constant 0xFF800000 : f32
    %142 = vector.shape_cast %20 : vector<1x1x256xi1> to vector<1x1x256xi1>
    %143 = vector.broadcast %142 : vector<1x1x256xi1> to vector<1x8x256xi1>
    %144 = vector.broadcast %cst_45 : f32 to vector<1x8x256xf32>
    %145 = arith.select %143, %144, %141 : vector<1x8x256xi1>, vector<1x8x256xf32>
    %cst_46 = arith.constant 0xFF800000 : f32
    %146 = vector.broadcast %cst_46 : f32 to vector<1x8x1xf32>
    %147 = vector.extract_strided_slice %138 {offsets = [0, 0, 0], sizes = [1, 8, 255], strides = [1, 1, 1]} : vector<1x8x256xf32> to vector<1x8x255xf32>
    %148 = tpu.concatenate %146, %147 in 2 : vector<1x8x1xf32>, vector<1x8x255xf32> -> vector<1x8x256xf32>
    %cst_47 = arith.constant 0xFF800000 : f32
    %149 = vector.shape_cast %18 : vector<1x1x256xi1> to vector<1x1x256xi1>
    %150 = vector.broadcast %149 : vector<1x1x256xi1> to vector<1x8x256xi1>
    %151 = vector.broadcast %cst_47 : f32 to vector<1x8x256xf32>
    %152 = arith.select %150, %151, %148 : vector<1x8x256xi1>, vector<1x8x256xf32>
    %153 = arith.maximumf %145, %152 : vector<1x8x256xf32>
    %154 = arith.maximumf %138, %153 : vector<1x8x256xf32>
    %155 = vector.extract_strided_slice %154 {offsets = [0, 0, 16], sizes = [1, 8, 240], strides = [1, 1, 1]} : vector<1x8x256xf32> to vector<1x8x240xf32>
    %cst_48 = arith.constant 0xFF800000 : f32
    %156 = vector.broadcast %cst_48 : f32 to vector<1x8x16xf32>
    %157 = tpu.concatenate %155, %156 in 2 : vector<1x8x240xf32>, vector<1x8x16xf32> -> vector<1x8x256xf32>
    %cst_49 = arith.constant 0xFF800000 : f32
    %158 = vector.broadcast %cst_49 : f32 to vector<1x8x16xf32>
    %159 = vector.extract_strided_slice %154 {offsets = [0, 0, 0], sizes = [1, 8, 240], strides = [1, 1, 1]} : vector<1x8x256xf32> to vector<1x8x240xf32>
    %160 = tpu.concatenate %158, %159 in 2 : vector<1x8x16xf32>, vector<1x8x240xf32> -> vector<1x8x256xf32>
    %161 = arith.maximumf %157, %160 : vector<1x8x256xf32>
    %162 = arith.maximumf %154, %161 : vector<1x8x256xf32>
    %c0_50 = arith.constant 0 : index
    %c0_51 = arith.constant 0 : index
    %163 = vector.load %arg6[%c0_50, %c0_51] : memref<256x64xf32, #tpu.memory_space<vmem>>, vector<256x64xf32>
    %164 = vector.shape_cast %162 : vector<1x8x256xf32> to vector<8x256xf32>
    %cst_52 = arith.constant dense<0.000000e+00> : vector<8x64xf32>
    %165 = tpu.matmul %164, %163, %cst_52 {dimension_numbers = #tpu.dot_dimension_numbers<[1], [0], [0], [1], [0, 0, 1, 1], [], []>} : vector<8x256xf32>, vector<256x64xf32>, vector<8x64xf32> -> vector<8x64xf32>
    %166 = vector.shape_cast %165 : vector<8x64xf32> to vector<1x8x64xf32>
    %167 = vector.shape_cast %21 : vector<1x8x256xf32> to vector<8x256xf32>
    %cst_53 = arith.constant dense<0.000000e+00> : vector<8x64xf32>
    %168 = tpu.matmul %167, %163, %cst_53 {dimension_numbers = #tpu.dot_dimension_numbers<[1], [0], [0], [1], [0, 0, 1, 1], [], []>} : vector<8x256xf32>, vector<256x64xf32>, vector<8x64xf32> -> vector<8x64xf32>
    %169 = vector.shape_cast %168 : vector<8x64xf32> to vector<1x8x64xf32>
    %c0_54 = arith.constant 0 : index
    %c0_55 = arith.constant 0 : index
    %170 = vector.load %arg4[%c0_54, %c0_55] : memref<8x8xf32, #tpu.memory_space<vmem>>, vector<8x8xf32>
    %171 = vector.shape_cast %170 : vector<8x8xf32> to vector<1x8x8xf32>
    %cst_56 = arith.constant dense<0.000000e+00> : vector<1x8x64xf32>
    %172 = tpu.matmul %171, %169, %cst_56 {dimension_numbers = #tpu.dot_dimension_numbers<[2], [1], [1], [2], [0, 0, 0, 1, 1, 2], [0], [0]>} : vector<1x8x8xf32>, vector<1x8x64xf32>, vector<1x8x64xf32> -> vector<1x8x64xf32>
    %173 = arith.addf %166, %172 : vector<1x8x64xf32>
    %174 = vector.extract_strided_slice %22 {offsets = [2, 0, 0], sizes = [1, 8, 256], strides = [1, 1, 1]} : vector<3x8x256xf32> to vector<1x8x256xf32>
    %175 = vector.shape_cast %174 : vector<1x8x256xf32> to vector<8x256xf32>
    %176 = vector.extract_strided_slice %175 {offsets = [0, 0], sizes = [8, 64], strides = [1, 1]} : vector<8x256xf32> to vector<8x64xf32>
    %177 = vector.shape_cast %176 : vector<8x64xf32> to vector<1x8x64xf32>
    %178 = arith.addf %173, %177 : vector<1x8x64xf32>
    %c0_57 = arith.constant 0 : index
    %c0_58 = arith.constant 0 : index
    %c0_59 = arith.constant 0 : index
    %179 = vector.load %arg7[%c0_57, %c0_58, %c0_59] : memref<1x8x64xf32, #tpu.memory_space<vmem>>, vector<1x8x64xf32>
    tpu.vector_store %arg7[%c0_57, %c0_58, %c0_59], %178 {strides = array<i32>} : memref<1x8x64xf32, #tpu.memory_space<vmem>>, vector<1x8x64xf32>,
    return
  }
  func.func @transform_0(%arg0: i32) -> (i32, i32, i32) {
    %c0_i32 = arith.constant 0 : i32
    %c0_i32_0 = arith.constant 0 : i32
    %c0_i32_1 = arith.constant 0 : i32
    return %arg0, %c0_i32, %c0_i32_0 : i32, i32, i32
  }
  func.func @transform_1(%arg0: i32) -> (i32, i32) {
    %c0_i32 = arith.constant 0 : i32
    %c0_i32_0 = arith.constant 0 : i32
    %c0_i32_1 = arith.constant 0 : i32
    return %c0_i32, %c0_i32_0 : i32, i32
  }
  func.func @transform_2(%arg0: i32) -> (i32, i32) {
    %c0_i32 = arith.constant 0 : i32
    %c0_i32_0 = arith.constant 0 : i32
    %c0_i32_1 = arith.constant 0 : i32
    return %c0_i32, %c0_i32_0 : i32, i32
  }
  func.func @transform_3(%arg0: i32) -> (i32, i32) {
    %c0_i32 = arith.constant 0 : i32
    %c0_i32_0 = arith.constant 0 : i32
    %c0_i32_1 = arith.constant 0 : i32
    return %c0_i32, %c0_i32_0 : i32, i32
  }
  func.func @transform_4(%arg0: i32) -> (i32, i32, i32) {
    %c0_i32 = arith.constant 0 : i32
    %c0_i32_0 = arith.constant 0 : i32
    %c0_i32_1 = arith.constant 0 : i32
    %c0_i32_2 = arith.constant 0 : i32
    return %c0_i32, %c0_i32_0, %c0_i32_1 : i32, i32, i32
  }
  func.func @transform_5(%arg0: i32) -> (i32, i32) {
    %c0_i32 = arith.constant 0 : i32
    %c0_i32_0 = arith.constant 0 : i32
    %c0_i32_1 = arith.constant 0 : i32
    return %c0_i32, %c0_i32_0 : i32, i32
  }
  func.func @transform_6(%arg0: i32) -> (i32, i32, i32) {
    %c0_i32 = arith.constant 0 : i32
    %c0_i32_0 = arith.constant 0 : i32
    %c0_i32_1 = arith.constant 0 : i32
    return %arg0, %c0_i32, %c0_i32_0 : i32, i32, i32
  }
}

</mosaic_0001>

<llo_original>
// kernel: tpu_custom_call.1
$region0: #{tpu_custom_call.1}
  #allocation0 [shape = 'u32[]', space=smem, size = 0x4, offset = 0x4, fixed_abs, tag = 'smem constant byte address 0x4 - core index']
  #allocation1 [shape = 'u32[144,128]{1,0:T(1,128)}', space=vmem, size = 0x12000, scoped, tag = 'internal scratch']
  %s0 = inlined_call_operand.vmem [shape: f32[2,8,256], index: 0, kind: input, shape index: {}]
  %s1 = inlined_call_operand.vmem [shape: f32[8,72], index: 1, kind: input, shape index: {}]
  %s2 = inlined_call_operand.vmem [shape: f32[8,72], index: 2, kind: input, shape index: {}]
  %s3 = inlined_call_operand.vmem [shape: f32[8,8], index: 3, kind: input, shape index: {}]
  %s4 = inlined_call_operand.vmem [shape: f32[3,8,256], index: 4, kind: input, shape index: {}]
  %s5 = inlined_call_operand.vmem [shape: f32[256,64], index: 5, kind: input, shape index: {}]
  %s6 = inlined_call_operand.hbm [shape: f32[2,8,64], index: 6, kind: output, shape index: {}]
  %s7 = sld [smem:[#allocation0]]
  $region57: #{tpu_custom_call.1} parent=0
    _
  %s9 = ssub.s32 1, %s7
  %s10 = scalar_select 0, %s9, %s7
  $region1: #{tpu_custom_call.1} parent=0
    #allocation2 [shape = 'u8[8192]{0}', space=vmem, size = 0x2000, scoped, tag = 'output window, operand 0']
    #allocation3 [shape = 's32[2]{0}', space=sflag, size = 0x8, scoped, tag = 'scoped memory for tpu_custom_call.1']
    %11 = vsyncpa [#allocation3], 0
    %s12 = scalar_lea.sflag [#allocation3], 1
    %13 = vsyncpa %s12, 0
    loop: start=0, step=1, limit=4
    $region2: #{tpu_custom_call.1} parent=1 // loop_pre_header
      _
    $region3: #{tpu_custom_call.1} parent=1 // loop_header
      %s15 = sphi 0, %s19
      %p16 = scmp.ge.s32.totalorder %s15, 4
      %s25 = sphi 0, %s27
      %s28 = sphi 0, %s25
      %s29 = sphi 0, %s28
      %s45 = sphi 0, %s29
      %s49 = sphi 0, %s49
      %s51 = sphi 0, %s49
      %s52 = sphi 0, %s51
      %s66 = sphi 0, %s52
      %s70 = sphi 0, %s70
      %s72 = sphi 0, %s70
      %s73 = sphi 0, %s72
      %s87 = sphi 0, %s73
      %s91 = sphi 0, %s91
      %s93 = sphi 0, %s91
      %s94 = sphi 0, %s93
      %s108 = sphi 0, %s94
      %s112 = sphi 0, %s112
      %s114 = sphi 0, %s112
      %s115 = sphi 0, %s114
      %s129 = sphi 0, %s115
      %s133 = sphi 0, %s133
      %s135 = sphi 0, %s133
      %s136 = sphi 0, %s135
      %s150 = sphi 0, %s136
      %s156 = sphi 0, %s158
      %s159 = sphi 0, %s156
      %s160 = sphi 0, %s159
      %s176 = sphi 0, %s160
    $region4: #{tpu_custom_call.1} parent=1 // loop_header_branch
      %18 = sbr.rel (%p16) target = $region8
    $region5: #{tpu_custom_call.1} parent=1 // loop_body
      %s20 = ssub.s32 %s15, 1
      %s21 = ssub.s32 %s15, 2
      %s22 = sadd.s32 %s15, 1
      %s23 = ssub.s32 %s15, %s22
      %p24 = scmp.eq.s32.totalorder %s23, 0
      %s26 = sadd.s32 %s25, 1
      %s27 = scalar_select %p24, %s25, %s26
      %p30 = pneg %p24
      %p31 = scmp.eq.s32.totalorder %s15, 1
      %p32 = por %p30, %p31
      %p33 = scmp.ne.s32.totalorder %s25, %s28
      %p34 = scmp.eq.s32.totalorder %s15, 0
      %p35 = por %p33, %p34
      %p36 = scmp.ne.s32.totalorder %s25, %s28
      %p37 = scmp.eq.s32.totalorder %s20, 1
      %p38 = por %p36, %p37
      %p39 = scmp.ne.s32.totalorder %s28, %s29
      %p40 = scmp.eq.s32.totalorder %s20, 0
      %p41 = por %p39, %p40
      %p42 = scmp.ne.s32.totalorder %s28, %s29
      %p43 = scmp.eq.s32.totalorder %s21, 1
      %p44 = por %p42, %p43
      %p46 = scmp.ne.s32.totalorder %s29, %s45
      %p47 = scmp.eq.s32.totalorder %s21, 0
      %p48 = por %p46, %p47
      %s50 = sadd.s32 %s49, 1
      %p53 = scmp.eq.s32.totalorder %s15, 1
      %p54 = scmp.ne.s32.totalorder %s49, %s51
      %p55 = scmp.eq.s32.totalorder %s15, 0
      %p56 = por %p54, %p55
      %p57 = scmp.ne.s32.totalorder %s49, %s51
      %p58 = scmp.eq.s32.totalorder %s20, 1
      %p59 = por %p57, %p58
      %p60 = scmp.ne.s32.totalorder %s51, %s52
      %p61 = scmp.eq.s32.totalorder %s20, 0
      %p62 = por %p60, %p61
      %p63 = scmp.ne.s32.totalorder %s51, %s52
      %p64 = scmp.eq.s32.totalorder %s21, 1
      %p65 = por %p63, %p64
      %p67 = scmp.ne.s32.totalorder %s52, %s66
      %p68 = scmp.eq.s32.totalorder %s21, 0
      %p69 = por %p67, %p68
      %s71 = sadd.s32 %s70, 1
      %p74 = scmp.eq.s32.totalorder %s15, 1
      %p75 = scmp.ne.s32.totalorder %s70, %s72
      %p76 = scmp.eq.s32.totalorder %s15, 0
      %p77 = por %p75, %p76
      %p78 = scmp.ne.s32.totalorder %s70, %s72
      %p79 = scmp.eq.s32.totalorder %s20, 1
      %p80 = por %p78, %p79
      %p81 = scmp.ne.s32.totalorder %s72, %s73
      %p82 = scmp.eq.s32.totalorder %s20, 0
      %p83 = por %p81, %p82
      %p84 = scmp.ne.s32.totalorder %s72, %s73
      %p85 = scmp.eq.s32.totalorder %s21, 1
      %p86 = por %p84, %p85
      %p88 = scmp.ne.s32.totalorder %s73, %s87
      %p89 = scmp.eq.s32.totalorder %s21, 0
      %p90 = por %p88, %p89
      %s92 = sadd.s32 %s91, 1
      %p95 = scmp.eq.s32.totalorder %s15, 1
      %p96 = scmp.ne.s32.totalorder %s91, %s93
      %p97 = scmp.eq.s32.totalorder %s15, 0
      %p98 = por %p96, %p97
      %p99 = scmp.ne.s32.totalorder %s91, %s93
      %p100 = scmp.eq.s32.totalorder %s20, 1
      %p101 = por %p99, %p100
      %p102 = scmp.ne.s32.totalorder %s93, %s94
      %p103 = scmp.eq.s32.totalorder %s20, 0
      %p104 = por %p102, %p103
      %p105 = scmp.ne.s32.totalorder %s93, %s94
      %p106 = scmp.eq.s32.totalorder %s21, 1
      %p107 = por %p105, %p106
      %p109 = scmp.ne.s32.totalorder %s94, %s108
      %p110 = scmp.eq.s32.totalorder %s21, 0
      %p111 = por %p109, %p110
      %s113 = sadd.s32 %s112, 1
      %p116 = scmp.eq.s32.totalorder %s15, 1
      %p117 = scmp.ne.s32.totalorder %s112, %s114
      %p118 = scmp.eq.s32.totalorder %s15, 0
      %p119 = por %p117, %p118
      %p120 = scmp.ne.s32.totalorder %s112, %s114
      %p121 = scmp.eq.s32.totalorder %s20, 1
      %p122 = por %p120, %p121
      %p123 = scmp.ne.s32.totalorder %s114, %s115
      %p124 = scmp.eq.s32.totalorder %s20, 0
      %p125 = por %p123, %p124
      %p126 = scmp.ne.s32.totalorder %s114, %s115
      %p127 = scmp.eq.s32.totalorder %s21, 1
      %p128 = por %p126, %p127
      %p130 = scmp.ne.s32.totalorder %s115, %s129
      %p131 = scmp.eq.s32.totalorder %s21, 0
      %p132 = por %p130, %p131
      %s134 = sadd.s32 %s133, 1
      %p137 = scmp.eq.s32.totalorder %s15, 1
      %p138 = scmp.ne.s32.totalorder %s133, %s135
      %p139 = scmp.eq.s32.totalorder %s15, 0
      %p140 = por %p138, %p139
      %p141 = scmp.ne.s32.totalorder %s133, %s135
      %p142 = scmp.eq.s32.totalorder %s20, 1
      %p143 = por %p141, %p142
      %p144 = scmp.ne.s32.totalorder %s135, %s136
      %p145 = scmp.eq.s32.totalorder %s20, 0
      %p146 = por %p144, %p145
      %p147 = scmp.ne.s32.totalorder %s135, %s136
      %p148 = scmp.eq.s32.totalorder %s21, 1
      %p149 = por %p147, %p148
      %p151 = scmp.ne.s32.totalorder %s136, %s150
      %p152 = scmp.eq.s32.totalorder %s21, 0
      %p153 = por %p151, %p152
      %s154 = ssub.s32 %s15, %s22
      %p155 = scmp.eq.s32.totalorder %s154, 0
      %s157 = sadd.s32 %s156, 1
      %s158 = scalar_select %p155, %s156, %s157
      %p161 = pneg %p155
      %p162 = scmp.eq.s32.totalorder %s15, 1
      %p163 = por %p161, %p162
      %p164 = scmp.ne.s32.totalorder %s156, %s159
      %p165 = scmp.eq.s32.totalorder %s15, 0
      %p166 = por %p164, %p165
      %p167 = scmp.ne.s32.totalorder %s156, %s159
      %p168 = scmp.eq.s32.totalorder %s20, 1
      %p169 = por %p167, %p168
      %p170 = scmp.ne.s32.totalorder %s159, %s160
      %p171 = scmp.eq.s32.totalorder %s20, 0
      %p172 = por %p170, %p171
      %p173 = scmp.ne.s32.totalorder %s159, %s160
      %p174 = scmp.eq.s32.totalorder %s21, 1
      %p175 = por %p173, %p174
      %p177 = scmp.ne.s32.totalorder %s160, %s176
      %p178 = scmp.eq.s32.totalorder %s21, 0
      %p179 = por %p177, %p178
      %p180 = scmp.le.s32.totalorder 1, %s15
      %p181 = scmp.lt.s32.totalorder %s15, 3
      %p182 = pnand %p180, %p181
      %p183 = pneg %p182
      // Predicated region
      $region9: #{tpu_custom_call.1} parent=5 // pred_check
        _
      $region10: #{tpu_custom_call.1} parent=5 // pred_check_branch
        %185 = sbr.rel (%p182) target = $region12
      $region11: #{tpu_custom_call.1} parent=5 // pred_region
        %s186 = ssub.s32 %s15, 1
        // Predicated region
        $region13: #{tpu_custom_call.1} parent=11 // pred_check
          %p187 = pneg %p62
        $region14: #{tpu_custom_call.1} parent=11 // pred_check_branch
          %189 = sbr.rel (%p187) target = $region16
        $region15: #{tpu_custom_call.1} parent=11 // pred_region
          _
        $region16: #{tpu_custom_call.1} parent=11 // pred_fallthru
          _
        // Predicated region
        $region17: #{tpu_custom_call.1} parent=11 // pred_check
          %p190 = pneg %p83
        $region18: #{tpu_custom_call.1} parent=11 // pred_check_branch
          %192 = sbr.rel (%p190) target = $region20
        $region19: #{tpu_custom_call.1} parent=11 // pred_region
          _
        $region20: #{tpu_custom_call.1} parent=11 // pred_fallthru
          _
        // Predicated region
        $region21: #{tpu_custom_call.1} parent=11 // pred_check
          %p193 = pneg %p104
        $region22: #{tpu_custom_call.1} parent=11 // pred_check_branch
          %195 = sbr.rel (%p193) target = $region24
        $region23: #{tpu_custom_call.1} parent=11 // pred_region
          _
        $region24: #{tpu_custom_call.1} parent=11 // pred_fallthru
          _
        // Predicated region
        $region25: #{tpu_custom_call.1} parent=11 // pred_check
          %p196 = pneg %p125
        $region26: #{tpu_custom_call.1} parent=11 // pred_check_branch
          %198 = sbr.rel (%p196) target = $region28
        $region27: #{tpu_custom_call.1} parent=11 // pred_region
          _
        $region28: #{tpu_custom_call.1} parent=11 // pred_fallthru
          _
        // Predicated region
        $region29: #{tpu_custom_call.1} parent=11 // pred_check
          %p199 = pneg %p146
        $region30: #{tpu_custom_call.1} parent=11 // pred_check_branch
          %201 = sbr.rel (%p199) target = $region32
        $region31: #{tpu_custom_call.1} parent=11 // pred_region
          _
        $region32: #{tpu_custom_call.1} parent=11 // pred_fallthru
          _
      $region12: #{tpu_custom_call.1} parent=5 // pred_fallthru
        _
      %p202 = scmp.lt.s32.totalorder %s15, 2
      // Predicated region
      $region33: #{tpu_custom_call.1} parent=5 // pred_check
        %p203 = pneg %p202
      $region34: #{tpu_custom_call.1} parent=5 // pred_check_branch
        %205 = sbr.rel (%p203) target = $region36
      $region35: #{tpu_custom_call.1} parent=5 // pred_region
        // Predicated region
        $region37: #{tpu_custom_call.1} parent=35 // pred_check
          %p206 = pneg %p35
        $region38: #{tpu_custom_call.1} parent=35 // pred_check_branch
          %208 = sbr.rel (%p206) target = $region40
        $region39: #{tpu_custom_call.1} parent=35 // pred_region
          %p209 = scmp.lt.s32.totalorder %s15, 1
          %s210 = scalar_select %p209, %s15, 1
          %s211 = smul.addr %s210, 2
          %s212 = smul.addr %s211, 8
          %s213 = scalar_lea.vmem %s0, %s212
        $region40: #{tpu_custom_call.1} parent=35 // pred_fallthru
          _
      $region36: #{tpu_custom_call.1} parent=5 // pred_fallthru
        _
      %p214 = scmp.le.s32.totalorder 1, %s15
      %p215 = scmp.lt.s32.totalorder %s15, 3
      %p216 = pnand %p214, %p215
      %p217 = pneg %p216
      // Predicated region
      $region41: #{tpu_custom_call.1} parent=5 // pred_check
        _
      $region42: #{tpu_custom_call.1} parent=5 // pred_check_branch
        %219 = sbr.rel (%p216) target = $region44
      $region43: #{tpu_custom_call.1} parent=5 // pred_region
        %s220 = ssub.s32 %s15, 1
        %p221 = scmp.lt.s32.totalorder %s20, 1
        %s222 = scalar_select %p221, %s20, 1
        %s223 = smul.addr %s222, 2
        %s224 = smul.addr %s223, 8
        %s225 = scalar_lea.vmem %s0, %s224
        %p226 = pneg %p41
        %p227 = pneg %p38
        %p228 = pneg %p62
        %p229 = pneg %p59
        %p230 = pneg %p83
        %p231 = pneg %p80
        %p232 = pneg %p104
        %p233 = pneg %p101
        %p234 = pneg %p125
        %p235 = pneg %p122
        %p236 = pneg %p146
        %p237 = pneg %p143
        %p238 = pneg %p172
        %p239 = pneg %p169
        %s240 = sand.u32 %s159, 1
        %s241 = scalar_lea.sflag [#allocation3], %s240
        %s242 = sand.u32 %s159, 1
        %s243 = smul.addr %s242, 8
        %s244 = scalar_lea.vmem [#allocation2], %s243
        %p245 = scmp.lt.s32.totalorder %s20, 1
        %s246 = scalar_select %p245, %s20, 1
        %s247 = smul.addr %s246, 2
        %s248 = smul.addr %s247, 8
        %s249 = scalar_lea.vmem %s0, %s248
        %v250 = vlaneseq
        %v251 = vand.u32 %v250, 127
        %v252 = vadd.s32 %v251, 128
        %vm253 = vcmp.lt.s32.totalorder %v251, 0
        %v254 = vsub.s32 0, %v251
        %v255 = vsel %vm253, %v254, %v251
        %v256 = vshrl.u32 %v255, 4
        %v257 = vand.u32 %v255, 15
        %v258 = vsub.s32 0, %v257
        %v259 = vsel %vm253, %v258, %v257
        %vm260 = vcmp.lt.s32.totalorder %v252, 0
        %v261 = vsub.s32 0, %v252
        %v262 = vsel %vm260, %v261, %v252
        %v263 = vshrl.u32 %v262, 4
        %v264 = vand.u32 %v262, 15
        %v265 = vsub.s32 0, %v264
        %v266 = vsel %vm260, %v265, %v264
        %vm267 = vcmp.ne.s32.totalorder %v259, 0
        %vm268 = vcmp.ne.s32.totalorder %v266, 0
        %vm269 = vcmp.lt.s32.totalorder %v259, 0
        %vm270 = vcmp.lt.s32.totalorder %v266, 0
        %vm271 = vmand %vm269, %vm267
        %vm272 = vmand %vm270, %vm268
        %v273 = vadd.s32 %v259, 16
        %v274 = vadd.s32 %v266, 16
        %v275 = vsel %vm271, %v273, %v259
        %v276 = vsel %vm272, %v274, %v266
        %vm277 = vcmp.eq.s32.totalorder %v275, 0
        %vm278 = vcmp.eq.s32.totalorder %v276, 0
        %vm279 = vcmp.eq.s32.totalorder %v275, 15
        %vm280 = vcmp.eq.s32.totalorder %v276, 15
        %v281 = vld [vmem:[%s249] sm:$0xff]
        %v282 = vld [vmem:[%s249 + $0x8] sm:$0xff]
        %v283 = vld [vmem:[%s4] sm:$0xff]
        %v284 = vld [vmem:[%s4 + $0x8] sm:$0xff]
        %v285 = vld [vmem:[%s4 + $0x10] sm:$0xff]
        %v286 = vld [vmem:[%s4 + $0x18] sm:$0xff]
        %v287 = vld [vmem:[%s4 + $0x20] sm:$0xff]
        %v288 = vmax.f32 %v281, 0.0
        %v289 = vmax.f32 %v282, 0.0
        %292 = vrot.lane.b32.xlu0 %v288, 17
        %v293 = vpop.permute.xlu0 %292
        %294 = vrot.lane.b32.xlu0 %v289, 17
        %v295 = vpop.permute.xlu0 %294
        %vm296 = vcmask 138240
        %v297 = vsel %vm296, %v293, %v295
        %v300 = vsel %vm296, 0.0, %v293
        %v301 = vsel %vm277, 1, 0
        %v302 = vsel %vm278, 1, 0
        %vm303 = vcmp.eq.s32.totalorder %v301, 1
        %vm304 = vcmp.eq.s32.totalorder %v302, 1
        %v305 = vsel %vm303, 0.0, %v300
        %v306 = vsel %vm304, 0.0, %v297
        %307 = vrot.lane.b32.xlu0 %v288, 16
        %v308 = vpop.permute.xlu0 %307
        %309 = vrot.lane.b32.xlu0 %v289, 16
        %v310 = vpop.permute.xlu0 %309
        %vm311 = vcmask 130048
        %v312 = vsel %vm311, %v308, %v310
        %v315 = vsel %vm311, 0.0, %v308
        %316 = vrot.lane.b32.xlu0 %v288, 15
        %v317 = vpop.permute.xlu0 %316
        %318 = vrot.lane.b32.xlu0 %v289, 15
        %v319 = vpop.permute.xlu0 %318
        %vm320 = vcmask 121856
        %v321 = vsel %vm320, %v317, %v319
        %v324 = vsel %vm320, 0.0, %v317
        %v325 = vsel %vm279, 1, 0
        %v326 = vsel %vm280, 1, 0
        %vm327 = vcmp.eq.s32.totalorder %v325, 1
        %vm328 = vcmp.eq.s32.totalorder %v326, 1
        %v329 = vsel %vm327, 0.0, %v324
        %v330 = vsel %vm328, 0.0, %v321
        %331 = vrot.lane.b32.xlu0 %v288, 1
        %v332 = vpop.permute.xlu0 %331
        %333 = vrot.lane.b32.xlu0 %v289, 1
        %v334 = vpop.permute.xlu0 %333
        %vm335 = vcmask 7168
        %v336 = vsel %vm335, %v332, %v334
        %v339 = vsel %vm335, 0.0, %v332
        %v340 = vsel %vm303, 0.0, %v339
        %v341 = vsel %vm304, 0.0, %v336
        %342 = vrot.lane.b32.xlu0 %v288, 127
        %v343 = vpop.permute.xlu0 %342
        %344 = vrot.lane.b32.xlu0 %v289, 127
        %v345 = vpop.permute.xlu0 %344
        %vm346 = vcmask 1039360
        %v347 = vsel %vm346, %v343, %v345
        %v350 = vsel %vm346, %v345, 0.0
        %v351 = vsel %vm327, 0.0, %v347
        %v352 = vsel %vm328, 0.0, %v350
        %353 = vrot.lane.b32.xlu0 %v288, 113
        %v354 = vpop.permute.xlu0 %353
        %355 = vrot.lane.b32.xlu0 %v289, 113
        %v356 = vpop.permute.xlu0 %355
        %vm357 = vcmask 924672
        %v358 = vsel %vm357, %v354, %v356
        %v361 = vsel %vm357, %v356, 0.0
        %v362 = vsel %vm303, 0.0, %v358
        %v363 = vsel %vm304, 0.0, %v361
        %364 = vrot.lane.b32.xlu0 %v288, 112
        %v365 = vpop.permute.xlu0 %364
        %366 = vrot.lane.b32.xlu0 %v289, 112
        %v367 = vpop.permute.xlu0 %366
        %vm368 = vcmask 916480
        %v369 = vsel %vm368, %v365, %v367
        %v372 = vsel %vm368, %v367, 0.0
        %373 = vrot.lane.b32.xlu0 %v288, 111
        %v374 = vpop.permute.xlu0 %373
        %375 = vrot.lane.b32.xlu0 %v289, 111
        %v376 = vpop.permute.xlu0 %375
        %vm377 = vcmask 908288
        %v378 = vsel %vm377, %v374, %v376
        %v381 = vsel %vm377, %v376, 0.0
        %v382 = vsel %vm327, 0.0, %v378
        %v383 = vsel %vm328, 0.0, %v381
        %v384 = vld [vmem:[%s1] sm:$0xff]
        %vm385 = vcmask 588800
        %v387 = vsel %vm385, %v384, 0
        %389 = vmatprep.subr.mxu0 0.0
        %390 = vmatpush1.msra.mxu0 0.0
        %391 = vmatprep.subr.mxu0 0.0
        %392 = vmatpush1.msra.mxu0 0.0
        %393 = vmatprep.subr.mxu0 0.0
        %394 = vmatpush1.msra.mxu0 0.0
        %395 = vmatprep.subr.mxu0 0.0
        %396 = vmatpush1.msra.mxu0 0.0
        %397 = vmatprep.subr.mxu0 0.0
        %398 = vmatpush1.msra.mxu0 0.0
        %399 = vmatprep.subr.mxu0 0.0
        %400 = vmatpush1.msra.mxu0 0.0
        %401 = vmatprep.subr.mxu0 0.0
        %402 = vmatpush1.msra.mxu0 0.0
        %403 = vmatprep.subr.mxu0 %v383
        %404 = vmatpush1.msra.mxu0 %v382
        %405 = vmatprep.subr.mxu0 %v372
        %406 = vmatpush1.msra.mxu0 %v369
        %407 = vmatprep.subr.mxu0 %v363
        %408 = vmatpush1.msra.mxu0 %v362
        %409 = vmatprep.subr.mxu0 %v352
        %410 = vmatpush1.msra.mxu0 %v351
        %411 = vmatprep.subr.mxu0 %v289
        %412 = vmatpush1.msra.mxu0 %v288
        %413 = vmatprep.subr.mxu0 %v341
        %414 = vmatpush1.msra.mxu0 %v340
        %415 = vmatprep.subr.mxu0 %v330
        %416 = vmatpush1.msra.mxu0 %v329
        %417 = vmatprep.subr.mxu0 %v312
        %418 = vmatpush1.msra.mxu0 %v315
        %419 = vmatprep.subr.mxu0 %v306
        %420 = vmatpush1.msra.mxu0 %v305
        %421 = vmatprep.subr.mxu0 0.0
        %422 = vmatpush2.msra.mxu0 0.0
        %423 = vmatprep.subr.mxu0 0.0
        %424 = vmatpush2.msra.mxu0 0.0
        %425 = vmatprep.subr.mxu0 0.0
        %426 = vmatpush2.msra.mxu0 0.0
        %427 = vmatprep.subr.mxu0 0.0
        %428 = vmatpush2.msra.mxu0 0.0
        %429 = vmatprep.subr.mxu0 0.0
        %430 = vmatpush2.msra.mxu0 0.0
        %431 = vmatprep.subr.mxu0 0.0
        %432 = vmatpush2.msra.mxu0 0.0
        %433 = vmatprep.subr.mxu0 0.0
        %434 = vmatpush2.msra.mxu0 0.0
        %435 = vmatprep.subr.mxu0 0.0
        %436 = vmatpush2.msra.mxu0 0.0
        %437 = vmatprep.subr.mxu0 0.0
        %438 = vmatpush2.msra.mxu0 0.0
        %439 = vmatprep.subr.mxu0 0.0
        %440 = vmatpush2.msra.mxu0 0.0
        %441 = vmatprep.subr.mxu0 0.0
        %442 = vmatpush2.msra.mxu0 0.0
        %443 = vmatprep.subr.mxu0 0.0
        %444 = vmatpush2.msra.mxu0 0.0
        %445 = vmatprep.subr.mxu0 0.0
        %446 = vmatpush2.msra.mxu0 0.0
        %447 = vmatprep.subr.mxu0 0.0
        %448 = vmatpush2.msra.mxu0 0.0
        %449 = vmatprep.subr.mxu0 0.0
        %450 = vmatpush2.msra.mxu0 0.0
        %451 = vmatprep.subr.mxu0 0.0
        %452 = vmatpush2.msra.mxu0 0.0
        %453 = vmatprep.mubr.f32.mxu0 0.0
        %454 = vmatmul.mubr.f32.gmra.mxu0 %v387
        %v455 = vpop.f32.mrf.mxu0
        %v456 = vadd.f32 %v283, %v455
        %v457 = vpop.f32.mrf.mxu0
        %v458 = vadd.f32 %v284, %v457
        %459 = vdwg.mxu0
        %v460 = vmax.f32 %v456, 0.0
        %v461 = vmax.f32 %v458, 0.0
        %464 = vrot.lane.b32.xlu0 %v460, 17
        %v465 = vpop.permute.xlu0 %464
        %466 = vrot.lane.b32.xlu0 %v461, 17
        %v467 = vpop.permute.xlu0 %466
        %v468 = vsel %vm296, %v465, %v467
        %v471 = vsel %vm296, 0.0, %v465
        %v472 = vsel %vm303, 0.0, %v471
        %v473 = vsel %vm304, 0.0, %v468
        %474 = vrot.lane.b32.xlu0 %v460, 16
        %v475 = vpop.permute.xlu0 %474
        %476 = vrot.lane.b32.xlu0 %v461, 16
        %v477 = vpop.permute.xlu0 %476
        %v478 = vsel %vm311, %v475, %v477
        %v481 = vsel %vm311, 0.0, %v475
        %482 = vrot.lane.b32.xlu0 %v460, 15
        %v483 = vpop.permute.xlu0 %482
        %484 = vrot.lane.b32.xlu0 %v461, 15
        %v485 = vpop.permute.xlu0 %484
        %v486 = vsel %vm320, %v483, %v485
        %v489 = vsel %vm320, 0.0, %v483
        %v490 = vsel %vm327, 0.0, %v489
        %v491 = vsel %vm328, 0.0, %v486
        %492 = vrot.lane.b32.xlu0 %v460, 1
        %v493 = vpop.permute.xlu0 %492
        %494 = vrot.lane.b32.xlu0 %v461, 1
        %v495 = vpop.permute.xlu0 %494
        %v496 = vsel %vm335, %v493, %v495
        %v499 = vsel %vm335, 0.0, %v493
        %v500 = vsel %vm303, 0.0, %v499
        %v501 = vsel %vm304, 0.0, %v496
        %502 = vrot.lane.b32.xlu0 %v460, 127
        %v503 = vpop.permute.xlu0 %502
        %504 = vrot.lane.b32.xlu0 %v461, 127
        %v505 = vpop.permute.xlu0 %504
        %v506 = vsel %vm346, %v503, %v505
        %v509 = vsel %vm346, %v505, 0.0
        %v510 = vsel %vm327, 0.0, %v506
        %v511 = vsel %vm328, 0.0, %v509
        %512 = vrot.lane.b32.xlu0 %v460, 113
        %v513 = vpop.permute.xlu0 %512
        %514 = vrot.lane.b32.xlu0 %v461, 113
        %v515 = vpop.permute.xlu0 %514
        %v516 = vsel %vm357, %v513, %v515
        %v519 = vsel %vm357, %v515, 0.0
        %v520 = vsel %vm303, 0.0, %v516
        %v521 = vsel %vm304, 0.0, %v519
        %522 = vrot.lane.b32.xlu0 %v460, 112
        %v523 = vpop.permute.xlu0 %522
        %524 = vrot.lane.b32.xlu0 %v461, 112
        %v525 = vpop.permute.xlu0 %524
        %v526 = vsel %vm368, %v523, %v525
        %v529 = vsel %vm368, %v525, 0.0
        %530 = vrot.lane.b32.xlu0 %v460, 111
        %v531 = vpop.permute.xlu0 %530
        %532 = vrot.lane.b32.xlu0 %v461, 111
        %v533 = vpop.permute.xlu0 %532
        %v534 = vsel %vm377, %v531, %v533
        %v537 = vsel %vm377, %v533, 0.0
        %v538 = vsel %vm327, 0.0, %v534
        %v539 = vsel %vm328, 0.0, %v537
        %v540 = vld [vmem:[%s2] sm:$0xff]
        %v542 = vsel %vm385, %v540, 0
        %544 = vmatprep.subr.mxu0 0.0
        %545 = vmatpush1.msra.mxu0 0.0
        %546 = vmatprep.subr.mxu0 0.0
        %547 = vmatpush1.msra.mxu0 0.0
        %548 = vmatprep.subr.mxu0 0.0
        %549 = vmatpush1.msra.mxu0 0.0
        %550 = vmatprep.subr.mxu0 0.0
        %551 = vmatpush1.msra.mxu0 0.0
        %552 = vmatprep.subr.mxu0 0.0
        %553 = vmatpush1.msra.mxu0 0.0
        %554 = vmatprep.subr.mxu0 0.0
        %555 = vmatpush1.msra.mxu0 0.0
        %556 = vmatprep.subr.mxu0 0.0
        %557 = vmatpush1.msra.mxu0 0.0
        %558 = vmatprep.subr.mxu0 %v539
        %559 = vmatpush1.msra.mxu0 %v538
        %560 = vmatprep.subr.mxu0 %v529
        %561 = vmatpush1.msra.mxu0 %v526
        %562 = vmatprep.subr.mxu0 %v521
        %563 = vmatpush1.msra.mxu0 %v520
        %564 = vmatprep.subr.mxu0 %v511
        %565 = vmatpush1.msra.mxu0 %v510
        %566 = vmatprep.subr.mxu0 %v461
        %567 = vmatpush1.msra.mxu0 %v460
        %568 = vmatprep.subr.mxu0 %v501
        %569 = vmatpush1.msra.mxu0 %v500
        %570 = vmatprep.subr.mxu0 %v491
        %571 = vmatpush1.msra.mxu0 %v490
        %572 = vmatprep.subr.mxu0 %v478
        %573 = vmatpush1.msra.mxu0 %v481
        %574 = vmatprep.subr.mxu0 %v473
        %575 = vmatpush1.msra.mxu0 %v472
        %576 = vmatprep.subr.mxu0 0.0
        %577 = vmatpush2.msra.mxu0 0.0
        %578 = vmatprep.subr.mxu0 0.0
        %579 = vmatpush2.msra.mxu0 0.0
        %580 = vmatprep.subr.mxu0 0.0
        %581 = vmatpush2.msra.mxu0 0.0
        %582 = vmatprep.subr.mxu0 0.0
        %583 = vmatpush2.msra.mxu0 0.0
        %584 = vmatprep.subr.mxu0 0.0
        %585 = vmatpush2.msra.mxu0 0.0
        %586 = vmatprep.subr.mxu0 0.0
        %587 = vmatpush2.msra.mxu0 0.0
        %588 = vmatprep.subr.mxu0 0.0
        %589 = vmatpush2.msra.mxu0 0.0
        %590 = vmatprep.subr.mxu0 0.0
        %591 = vmatpush2.msra.mxu0 0.0
        %592 = vmatprep.subr.mxu0 0.0
        %593 = vmatpush2.msra.mxu0 0.0
        %594 = vmatprep.subr.mxu0 0.0
        %595 = vmatpush2.msra.mxu0 0.0
        %596 = vmatprep.subr.mxu0 0.0
        %597 = vmatpush2.msra.mxu0 0.0
        %598 = vmatprep.subr.mxu0 0.0
        %599 = vmatpush2.msra.mxu0 0.0
        %600 = vmatprep.subr.mxu0 0.0
        %601 = vmatpush2.msra.mxu0 0.0
        %602 = vmatprep.subr.mxu0 0.0
        %603 = vmatpush2.msra.mxu0 0.0
        %604 = vmatprep.subr.mxu0 0.0
        %605 = vmatpush2.msra.mxu0 0.0
        %606 = vmatprep.subr.mxu0 0.0
        %607 = vmatpush2.msra.mxu0 0.0
        %608 = vmatprep.mubr.f32.mxu0 0.0
        %609 = vmatmul.mubr.f32.gmra.mxu0 %v542
        %v610 = vpop.f32.mrf.mxu0
        %v611 = vadd.f32 %v285, %v610
        %v612 = vpop.f32.mrf.mxu0
        %v613 = vadd.f32 %v286, %v612
        %614 = vdwg.mxu0
        %617 = vrot.lane.b32.xlu0 %v611, 127
        %v618 = vpop.permute.xlu0 %617
        %619 = vrot.lane.b32.xlu0 %v613, 127
        %v620 = vpop.permute.xlu0 %619
        %v621 = vsel %vm346, %v618, %v620
        %v624 = vsel %vm346, %v620, -inf
        %v625 = vsel %vm327, -inf, %v621
        %v626 = vsel %vm328, -inf, %v624
        %627 = vrot.lane.b32.xlu0 %v611, 1
        %v628 = vpop.permute.xlu0 %627
        %629 = vrot.lane.b32.xlu0 %v613, 1
        %v630 = vpop.permute.xlu0 %629
        %v631 = vsel %vm335, %v628, %v630
        %v634 = vsel %vm335, -inf, %v628
        %v635 = vsel %vm303, -inf, %v634
        %v636 = vsel %vm304, -inf, %v631
        %v637 = vmax.f32 %v625, %v635
        %v638 = vmax.f32 %v626, %v636
        %v639 = vmax.f32 %v611, %v637
        %v640 = vmax.f32 %v613, %v638
        %643 = vrot.lane.b32.xlu0 %v639, 112
        %v644 = vpop.permute.xlu0 %643
        %645 = vrot.lane.b32.xlu0 %v640, 112
        %v646 = vpop.permute.xlu0 %645
        %v647 = vsel %vm368, %v644, %v646
        %v650 = vsel %vm368, %v646, -inf
        %651 = vrot.lane.b32.xlu0 %v639, 16
        %v652 = vpop.permute.xlu0 %651
        %653 = vrot.lane.b32.xlu0 %v640, 16
        %v654 = vpop.permute.xlu0 %653
        %v655 = vsel %vm311, %v652, %v654
        %v658 = vsel %vm311, -inf, %v652
        %v659 = vmax.f32 %v647, %v658
        %v660 = vmax.f32 %v650, %v655
        %v661 = vmax.f32 %v639, %v659
        %v662 = vmax.f32 %v640, %v660
        %v663 = vld [vmem:[%s5] sm:$0xff]
        %v664 = vld [vmem:[%s5 + $0x8] sm:$0xff]
        %v665 = vld [vmem:[%s5 + $0x10] sm:$0xff]
        %v666 = vld [vmem:[%s5 + $0x18] sm:$0xff]
        %v667 = vld [vmem:[%s5 + $0x20] sm:$0xff]
        %v668 = vld [vmem:[%s5 + $0x28] sm:$0xff]
        %v669 = vld [vmem:[%s5 + $0x30] sm:$0xff]
        %v670 = vld [vmem:[%s5 + $0x38] sm:$0xff]
        %v671 = vld [vmem:[%s5 + $0x40] sm:$0xff]
        %v672 = vld [vmem:[%s5 + $0x48] sm:$0xff]
        %v673 = vld [vmem:[%s5 + $0x50] sm:$0xff]
        %v674 = vld [vmem:[%s5 + $0x58] sm:$0xff]
        %v675 = vld [vmem:[%s5 + $0x60] sm:$0xff]
        %v676 = vld [vmem:[%s5 + $0x68] sm:$0xff]
        %v677 = vld [vmem:[%s5 + $0x70] sm:$0xff]
        %v678 = vld [vmem:[%s5 + $0x78] sm:$0xff]
        %v679 = vld [vmem:[%s5 + $0x80] sm:$0xff]
        %v680 = vld [vmem:[%s5 + $0x88] sm:$0xff]
        %v681 = vld [vmem:[%s5 + $0x90] sm:$0xff]
        %v682 = vld [vmem:[%s5 + $0x98] sm:$0xff]
        %v683 = vld [vmem:[%s5 + $0xa0] sm:$0xff]
        %v684 = vld [vmem:[%s5 + $0xa8] sm:$0xff]
        %v685 = vld [vmem:[%s5 + $0xb0] sm:$0xff]
        %v686 = vld [vmem:[%s5 + $0xb8] sm:$0xff]
        %v687 = vld [vmem:[%s5 + $0xc0] sm:$0xff]
        %v688 = vld [vmem:[%s5 + $0xc8] sm:$0xff]
        %v689 = vld [vmem:[%s5 + $0xd0] sm:$0xff]
        %v690 = vld [vmem:[%s5 + $0xd8] sm:$0xff]
        %v691 = vld [vmem:[%s5 + $0xe0] sm:$0xff]
        %v692 = vld [vmem:[%s5 + $0xe8] sm:$0xff]
        %v693 = vld [vmem:[%s5 + $0xf0] sm:$0xff]
        %v694 = vld [vmem:[%s5 + $0xf8] sm:$0xff]
        %695 = vmatprep.subr.mxu0 0.0
        %696 = vmatpush1.msra.mxu0 %v678
        %697 = vmatprep.subr.mxu0 0.0
        %698 = vmatpush1.msra.mxu0 %v677
        %699 = vmatprep.subr.mxu0 0.0
        %700 = vmatpush1.msra.mxu0 %v676
        %701 = vmatprep.subr.mxu0 0.0
        %702 = vmatpush1.msra.mxu0 %v675
        %703 = vmatprep.subr.mxu0 0.0
        %704 = vmatpush1.msra.mxu0 %v674
        %705 = vmatprep.subr.mxu0 0.0
        %706 = vmatpush1.msra.mxu0 %v673
        %707 = vmatprep.subr.mxu0 0.0
        %708 = vmatpush1.msra.mxu0 %v672
        %709 = vmatprep.subr.mxu0 0.0
        %710 = vmatpush1.msra.mxu0 %v671
        %711 = vmatprep.subr.mxu0 0.0
        %712 = vmatpush1.msra.mxu0 %v670
        %713 = vmatprep.subr.mxu0 0.0
        %714 = vmatpush1.msra.mxu0 %v669
        %715 = vmatprep.subr.mxu0 0.0
        %716 = vmatpush1.msra.mxu0 %v668
        %717 = vmatprep.subr.mxu0 0.0
        %718 = vmatpush1.msra.mxu0 %v667
        %719 = vmatprep.subr.mxu0 0.0
        %720 = vmatpush1.msra.mxu0 %v666
        %721 = vmatprep.subr.mxu0 0.0
        %722 = vmatpush1.msra.mxu0 %v665
        %723 = vmatprep.subr.mxu0 0.0
        %724 = vmatpush1.msra.mxu0 %v664
        %725 = vmatprep.subr.mxu0 0.0
        %726 = vmatpush1.msra.mxu0 %v663
        %727 = vmatprep.subr.mxu0 0.0
        %728 = vmatpush2.msra.mxu0 %v694
        %729 = vmatprep.subr.mxu0 0.0
        %730 = vmatpush2.msra.mxu0 %v693
        %731 = vmatprep.subr.mxu0 0.0
        %732 = vmatpush2.msra.mxu0 %v692
        %733 = vmatprep.subr.mxu0 0.0
        %734 = vmatpush2.msra.mxu0 %v691
        %735 = vmatprep.subr.mxu0 0.0
        %736 = vmatpush2.msra.mxu0 %v690
        %737 = vmatprep.subr.mxu0 0.0
        %738 = vmatpush2.msra.mxu0 %v689
        %739 = vmatprep.subr.mxu0 0.0
        %740 = vmatpush2.msra.mxu0 %v688
        %741 = vmatprep.subr.mxu0 0.0
        %742 = vmatpush2.msra.mxu0 %v687
        %743 = vmatprep.subr.mxu0 0.0
        %744 = vmatpush2.msra.mxu0 %v686
        %745 = vmatprep.subr.mxu0 0.0
        %746 = vmatpush2.msra.mxu0 %v685
        %747 = vmatprep.subr.mxu0 0.0
        %748 = vmatpush2.msra.mxu0 %v684
        %749 = vmatprep.subr.mxu0 0.0
        %750 = vmatpush2.msra.mxu0 %v683
        %751 = vmatprep.subr.mxu0 0.0
        %752 = vmatpush2.msra.mxu0 %v682
        %753 = vmatprep.subr.mxu0 0.0
        %754 = vmatpush2.msra.mxu0 %v681
        %755 = vmatprep.subr.mxu0 0.0
        %756 = vmatpush2.msra.mxu0 %v680
        %757 = vmatprep.subr.mxu0 0.0
        %758 = vmatpush2.msra.mxu0 %v679
        %759 = vmatprep.mubr.f32.mxu0 %v662
        %760 = vmatmul.mubr.f32.gmra.mxu0 %v661
        %v761 = vpop.f32.mrf.mxu0
        %v762 = vadd.f32 0.0, %v761
        %v763 = vpop.f32.mrf.mxu0
        %764 = vdwg.mxu0
        %765 = vmatprep.subr.mxu0 0.0
        %766 = vmatpush1.msra.mxu0 %v678
        %767 = vmatprep.subr.mxu0 0.0
        %768 = vmatpush1.msra.mxu0 %v677
        %769 = vmatprep.subr.mxu0 0.0
        %770 = vmatpush1.msra.mxu0 %v676
        %771 = vmatprep.subr.mxu0 0.0
        %772 = vmatpush1.msra.mxu0 %v675
        %773 = vmatprep.subr.mxu0 0.0
        %774 = vmatpush1.msra.mxu0 %v674
        %775 = vmatprep.subr.mxu0 0.0
        %776 = vmatpush1.msra.mxu0 %v673
        %777 = vmatprep.subr.mxu0 0.0
        %778 = vmatpush1.msra.mxu0 %v672
        %779 = vmatprep.subr.mxu0 0.0
        %780 = vmatpush1.msra.mxu0 %v671
        %781 = vmatprep.subr.mxu0 0.0
        %782 = vmatpush1.msra.mxu0 %v670
        %783 = vmatprep.subr.mxu0 0.0
        %784 = vmatpush1.msra.mxu0 %v669
        %785 = vmatprep.subr.mxu0 0.0
        %786 = vmatpush1.msra.mxu0 %v668
        %787 = vmatprep.subr.mxu0 0.0
        %788 = vmatpush1.msra.mxu0 %v667
        %789 = vmatprep.subr.mxu0 0.0
        %790 = vmatpush1.msra.mxu0 %v666
        %791 = vmatprep.subr.mxu0 0.0
        %792 = vmatpush1.msra.mxu0 %v665
        %793 = vmatprep.subr.mxu0 0.0
        %794 = vmatpush1.msra.mxu0 %v664
        %795 = vmatprep.subr.mxu0 0.0
        %796 = vmatpush1.msra.mxu0 %v663
        %797 = vmatprep.subr.mxu0 0.0
        %798 = vmatpush2.msra.mxu0 %v694
        %799 = vmatprep.subr.mxu0 0.0
        %800 = vmatpush2.msra.mxu0 %v693
        %801 = vmatprep.subr.mxu0 0.0
        %802 = vmatpush2.msra.mxu0 %v692
        %803 = vmatprep.subr.mxu0 0.0
        %804 = vmatpush2.msra.mxu0 %v691
        %805 = vmatprep.subr.mxu0 0.0
        %806 = vmatpush2.msra.mxu0 %v690
        %807 = vmatprep.subr.mxu0 0.0
        %808 = vmatpush2.msra.mxu0 %v689
        %809 = vmatprep.subr.mxu0 0.0
        %810 = vmatpush2.msra.mxu0 %v688
        %811 = vmatprep.subr.mxu0 0.0
        %812 = vmatpush2.msra.mxu0 %v687
        %813 = vmatprep.subr.mxu0 0.0
        %814 = vmatpush2.msra.mxu0 %v686
        %815 = vmatprep.subr.mxu0 0.0
        %816 = vmatpush2.msra.mxu0 %v685
        %817 = vmatprep.subr.mxu0 0.0
        %818 = vmatpush2.msra.mxu0 %v684
        %819 = vmatprep.subr.mxu0 0.0
        %820 = vmatpush2.msra.mxu0 %v683
        %821 = vmatprep.subr.mxu0 0.0
        %822 = vmatpush2.msra.mxu0 %v682
        %823 = vmatprep.subr.mxu0 0.0
        %824 = vmatpush2.msra.mxu0 %v681
        %825 = vmatprep.subr.mxu0 0.0
        %826 = vmatpush2.msra.mxu0 %v680
        %827 = vmatprep.subr.mxu0 0.0
        %828 = vmatpush2.msra.mxu0 %v679
        %829 = vmatprep.mubr.f32.mxu0 %v282
        %830 = vmatmul.mubr.f32.gmra.mxu0 %v281
        %v831 = vpop.f32.mrf.mxu0
        %v832 = vadd.f32 0.0, %v831
        %v833 = vpop.f32.mrf.mxu0
        %834 = vdwg.mxu0
        %v835 = vld [vmem:[%s3] sm:$0xff]
        %vm836 = vcmask 64512
        %v838 = vsel %vm836, %v835, 0
        %840 = vmatprep.subr.mxu0 0.0
        %841 = vmatpush1.msra.mxu0 0.0
        %842 = vmatprep.subr.mxu0 0.0
        %843 = vmatpush1.msra.mxu0 0.0
        %844 = vmatprep.subr.mxu0 0.0
        %845 = vmatpush1.msra.mxu0 0.0
        %846 = vmatprep.subr.mxu0 0.0
        %847 = vmatpush1.msra.mxu0 0.0
        %848 = vmatprep.subr.mxu0 0.0
        %849 = vmatpush1.msra.mxu0 0.0
        %850 = vmatprep.subr.mxu0 0.0
        %851 = vmatpush1.msra.mxu0 0.0
        %852 = vmatprep.subr.mxu0 0.0
        %853 = vmatpush1.msra.mxu0 0.0
        %854 = vmatprep.subr.mxu0 0.0
        %855 = vmatpush1.msra.mxu0 0.0
        %856 = vmatprep.subr.mxu0 0.0
        %857 = vmatpush1.msra.mxu0 0.0
        %858 = vmatprep.subr.mxu0 0.0
        %859 = vmatpush1.msra.mxu0 0.0
        %860 = vmatprep.subr.mxu0 0.0
        %861 = vmatpush1.msra.mxu0 0.0
        %862 = vmatprep.subr.mxu0 0.0
        %863 = vmatpush1.msra.mxu0 0.0
        %864 = vmatprep.subr.mxu0 0.0
        %865 = vmatpush1.msra.mxu0 0.0
        %866 = vmatprep.subr.mxu0 0.0
        %867 = vmatpush1.msra.mxu0 0.0
        %868 = vmatprep.subr.mxu0 0.0
        %869 = vmatpush1.msra.mxu0 0.0
        %870 = vmatprep.subr.mxu0 0.0
        %871 = vmatpush1.msra.mxu0 %v832
        %872 = vmatprep.subr.mxu0 0.0
        %873 = vmatpush2.msra.mxu0 0.0
        %874 = vmatprep.subr.mxu0 0.0
        %875 = vmatpush2.msra.mxu0 0.0
        %876 = vmatprep.subr.mxu0 0.0
        %877 = vmatpush2.msra.mxu0 0.0
        %878 = vmatprep.subr.mxu0 0.0
        %879 = vmatpush2.msra.mxu0 0.0
        %880 = vmatprep.subr.mxu0 0.0
        %881 = vmatpush2.msra.mxu0 0.0
        %882 = vmatprep.subr.mxu0 0.0
        %883 = vmatpush2.msra.mxu0 0.0
        %884 = vmatprep.subr.mxu0 0.0
        %885 = vmatpush2.msra.mxu0 0.0
        %886 = vmatprep.subr.mxu0 0.0
        %887 = vmatpush2.msra.mxu0 0.0
        %888 = vmatprep.subr.mxu0 0.0
        %889 = vmatpush2.msra.mxu0 0.0
        %890 = vmatprep.subr.mxu0 0.0
        %891 = vmatpush2.msra.mxu0 0.0
        %892 = vmatprep.subr.mxu0 0.0
        %893 = vmatpush2.msra.mxu0 0.0
        %894 = vmatprep.subr.mxu0 0.0
        %895 = vmatpush2.msra.mxu0 0.0
        %896 = vmatprep.subr.mxu0 0.0
        %897 = vmatpush2.msra.mxu0 0.0
        %898 = vmatprep.subr.mxu0 0.0
        %899 = vmatpush2.msra.mxu0 0.0
        %900 = vmatprep.subr.mxu0 0.0
        %901 = vmatpush2.msra.mxu0 0.0
        %902 = vmatprep.subr.mxu0 0.0
        %903 = vmatpush2.msra.mxu0 0.0
        %904 = vmatprep.mubr.f32.mxu0 0.0
        %905 = vmatmul.mubr.f32.gmra.mxu0 %v838
        %v906 = vpop.f32.mrf.mxu0
        %v907 = vadd.f32 0.0, %v906
        %v908 = vpop.f32.mrf.mxu0
        %909 = vdwg.mxu0
        %v910 = vadd.f32 %v762, %v907
        %v911 = vadd.f32 %v910, %v287
        %vm912 = vcmask 523264
        %913 = vst.msk [vmem:[%s244] sm:$0xff] %vm912, %v911
        %s914 = sand.u32 %s159, 1
        %s915 = scalar_lea.sflag [#allocation3], %s914
        %s916 = sand.u32 %s159, 1
        %s917 = smul.addr %s916, 8
        %s918 = scalar_lea.vmem [#allocation2], %s917
        // Predicated region
        $region45: #{tpu_custom_call.1} parent=43 // pred_check
          %p919 = pneg %p169
        $region46: #{tpu_custom_call.1} parent=43 // pred_check_branch
          %921 = sbr.rel (%p919) target = $region48
        $region47: #{tpu_custom_call.1} parent=43 // pred_region
          %s923 = ssub.s32 128, 128
          %924 = vsyncadd %s915, %s923
          %s925 = smul.addr %s20, 128
          %s926 = scalar_lea.hbm %s6, %s925
          %s928 = sshll.u32 %s918, 4
          %s929 = int_to_ptr.vmem [resolvable:$true] %s928
          %931 = dma.vmem_to_hbm [thread:$0]  %s929, 128, %s926, %s915
        $region48: #{tpu_custom_call.1} parent=43 // pred_fallthru
          _
      $region44: #{tpu_custom_call.1} parent=5 // pred_fallthru
        _
      %p932 = scmp.le.s32.totalorder 2, %s15
      // Predicated region
      $region49: #{tpu_custom_call.1} parent=5 // pred_check
        %p933 = pneg %p932
      $region50: #{tpu_custom_call.1} parent=5 // pred_check_branch
        %935 = sbr.rel (%p933) target = $region52
      $region51: #{tpu_custom_call.1} parent=5 // pred_region
        %s936 = ssub.s32 %s15, 2
        // Predicated region
        $region53: #{tpu_custom_call.1} parent=51 // pred_check
          %p937 = pneg %p175
        $region54: #{tpu_custom_call.1} parent=51 // pred_check_branch
          %939 = sbr.rel (%p937) target = $region56
        $region55: #{tpu_custom_call.1} parent=51 // pred_region
          %s940 = sand.u32 %s160, 1
          %s941 = scalar_lea.sflag [#allocation3], %s940
          %s942 = sand.u32 %s160, 1
          %s943 = smul.addr %s942, 8
          %s944 = scalar_lea.vmem [#allocation2], %s943
          %945 = dma.done %s941, 128
        $region56: #{tpu_custom_call.1} parent=51 // pred_fallthru
          _
      $region52: #{tpu_custom_call.1} parent=5 // pred_fallthru
        _
    $region6: #{tpu_custom_call.1} parent=1 // loop_footer
      %s19 = sadd.s32 1, %s15
    $region7: #{tpu_custom_call.1} parent=1 // loop_footer_branch
      %14 = sbr.rel target = $region3
    $region8: #{tpu_custom_call.1} parent=1 // loop_exit
      _
    %946 = vsyncpa [#allocation3], 1
    %s947 = scalar_lea.sflag [#allocation3], 1
    %948 = vsyncpa %s947, 1

</llo_original>
